<compile_context>
chip_gen: v7x
topology: tpu7x:2x2x1
jax: 0.10.0
libtpu: 0.0.40
codegen_flags: <defaults>
</compile_context>

<pallas_src>
import functools

import jax
import jax.numpy as jnp
from jax.experimental import pallas as pl
from jax.experimental.pallas import tpu as pltpu


def cwa_kernel(x_ref, m_ref, t_ref, w1_ref, b1_ref, w2_ref, b2_ref,
               v_ref, out_ref, *, inv_hw):
    # x_ref:  (TB, HW*C)  input dtype       m_ref: (HW*C, C) x.dtype 0/1 (mean)
    # t_ref:  (C, HW*C)   x.dtype 0/1 (tile over W)
    # w1_ref: (C, r) f32  b1_ref: (1, r) f32  w2_ref: (r, C) f32  b2_ref: (1, C) f32
    # v_ref:  (TB, C) f32 out_ref: (TB, HW*C) input dtype
    x = x_ref[...]                                                   # native dtype

    # AvgPool2d((1, W)) == mean over W: 0/1 tiled-identity matmul (native-dtype
    # MXU path, f32 accumulate) followed by a scalar 1/(H*W) scale in f32.
    fm = jnp.dot(x, m_ref[...], preferred_element_type=jnp.float32) * inv_hw  # (TB, C)

    # fc = Linear(C->r) -> Tanh -> Linear(r->C), all f32 on tiny (TB, ·) tensors.
    h = jnp.tanh(
        jnp.dot(fm, w1_ref[...], preferred_element_type=jnp.float32)
        + b1_ref[...]
    )                                                                # (TB, r)
    logits = (
        jnp.dot(h, w2_ref[...], preferred_element_type=jnp.float32)
        + b2_ref[...]
    )                                                                # (TB, C)

    # softmax over the channel dim (dim=3 in the torch module); exact divide.
    mx = jnp.max(logits, axis=-1, keepdims=True)
    e = jnp.exp(logits - mx)
    v = e / jnp.sum(e, axis=-1, keepdims=True)                       # (TB, C) f32
    v_ref[...] = v.astype(v_ref.dtype)

    # Broadcast v over W via the 0/1 tiling matmul (cast v to the constant's
    # dtype so the matmul stays on the native-dtype MXU path), then rescale x.
    # x_ref is re-read here so no f32 copy of the tile lives across the body.
    vr = jnp.dot(v.astype(t_ref.dtype), t_ref[...],
                 preferred_element_type=jnp.float32)                 # (TB, HWC)
    out_ref[...] = (x_ref[...].astype(jnp.float32) * vr).astype(out_ref.dtype)


def _tpu_hw():
    """Physical VMEM bytes per TensorCore and TensorCores per chip (best effort)."""
    vmem_bytes = None
    num_tc = 1
    try:
        info = pltpu.get_tpu_info()
        vmem_bytes = getattr(info, "vmem_capacity_bytes", None)
    except Exception:
        pass
    if not vmem_bytes:
        vmem_bytes = 64 << 20          # conservative (v7x per-TC) fallback
    try:
        kind = jax.devices()[0].device_kind.lower()
        if "v7" in kind or "7x" in kind:
            num_tc = 2                 # v7x: 2 TensorCores per chip
    except Exception:
        pass
    return int(vmem_bytes), num_tc


def _pick_block_batch(B, row_bytes, per_row_vmem, const_vmem, vmem_budget,
                      num_tc, target_tile_bytes):
    """Pick TB (batch rows per grid step).

    Targets ~target_tile_bytes per x tile, caps TB so the per-step VMEM
    footprint (double-buffered x/out tiles + f32 temporaries + resident
    constants) fits the budget with headroom, keeps TB sublane-aligned
    (multiple of 8) or equal to B, and -- only on multi-TensorCore chips --
    keeps an even number of grid steps so the megacore split is balanced.
    Single-TC chips (v5e/v6e) get the largest tile that fits (no forced
    multi-step grid).
    """
    if B <= 8:
        return B
    avail = vmem_budget - const_vmem - (4 << 20)          # fixed slack
    rows_vmem = max(8, avail // max(per_row_vmem, 1))
    rows_tile = max(8, target_tile_bytes // max(row_bytes, 1))
    tb = min(B, 1024, rows_vmem, rows_tile)
    if num_tc > 1:
        min_steps = 2 * num_tc
        steps = max(min_steps, -(-B // tb))
        if steps % 2:
            steps += 1
        tb = min(tb, -(-B // steps))
    tb = max(8, (tb // 8) * 8)                            # sublane alignment
    return min(tb, B)


def channel_wise_attention_pallas(x, w1, b1, w2, b2, *,
                                  target_tile_bytes=4 << 20):
    """x: [B, H, W, C] (H == 1).  w1: [C, r], b1: [r], w2: [r, C], b2: [C].

    Returns (v, out): v [B*H, C] float32, out [B, H, W, C] in x.dtype --
    matching the PyTorch module's outputs.  FC/softmax math is f32 in-kernel.
    """
    B, H, W, C = x.shape
    assert H == 1, "module's cat/reshape broadcast is only valid for H == 1"
    r = w1.shape[1]
    HWC = H * W * C
    f32 = jnp.float32

    # Lane-dense 2-D view of x (free only if x is contiguous NHWC).
    x2 = x.reshape(B, HWC)

    w1f = w1.astype(f32)
    w2f = w2.astype(f32)
    b1_2 = b1.reshape(1, r).astype(f32)
    b2_2 = b2.reshape(1, C).astype(f32)

    # Constant 0/1 tiled-identity matrices in x.dtype (exact), built once.
    # The 1/(H*W) mean scale is applied in-kernel as an f32 scalar.
    const_dtype = x.dtype
    eye = jnp.eye(C, dtype=const_dtype)
    m_mat = jnp.tile(eye, (H * W, 1))                  # (HWC, C)
    t_mat = jnp.tile(eye, (1, H * W))                  # (C, HWC)
    # TODO(synk): if HWC*C ever rivals the x tile in VMEM, replace the mean
    # matmul with an in-kernel accumulation over W lane-slices of x_ref.

    itemsize = jnp.dtype(x.dtype).itemsize
    const_itemsize = jnp.dtype(const_dtype).itemsize

    phys_vmem, num_tc = _tpu_hw()
    vmem_limit = max(32 << 20, (phys_vmem * 3) // 4)   # 96 MiB on 128-MiB chips, 48 MiB on v7x

    # Per-step VMEM cost per batch row: double-buffered x + out tiles (native
    # dtype) + f32 vr temp + short-lived f32 x view + small (TB, C) tensors.
    per_row_vmem = 4 * HWC * itemsize + 2 * HWC * 4 + 16 * C
    # Resident constants (budgeted double-buffered in case Buffered(1) is
    # unavailable) + FC weights.
    const_vmem = 4 * HWC * C * const_itemsize + 8 * (C * r + r * C + r + C)

    tb = _pick_block_batch(B, HWC * itemsize, per_row_vmem, const_vmem,
                           vmem_limit, num_tc, target_tile_bytes)
    steps = pl.cdiv(B, tb)

    cost = pl.CostEstimate(
        flops=int(4 * B * HWC * C + 4 * B * C * r + B * HWC),
        transcendentals=int(B * (r + C)),
        bytes_accessed=int(2 * B * HWC * itemsize + 4 * B * C
                           + 2 * HWC * C * const_itemsize
                           + 4 * (2 * C * r + r + C)),
    )

    out_shapes = (
        jax.ShapeDtypeStruct((B, C), f32),          # v (attention weights)
        jax.ShapeDtypeStruct((B, HWC), x.dtype),    # attended x
    )
    out_specs = (
        pl.BlockSpec((tb, C), lambda i: (i, 0)),
        pl.BlockSpec((tb, HWC), lambda i: (i, 0)),
    )
    kernel = functools.partial(cwa_kernel, inv_hw=float(1.0 / (H * W)))
    params = pltpu.CompilerParams(
        dimension_semantics=("parallel",),
        vmem_limit_bytes=int(vmem_limit),
    )

    def _call(const_mode):
        const_kw = {} if const_mode is None else {"pipeline_mode": const_mode}
        in_specs = [
            pl.BlockSpec((tb, HWC), lambda i: (i, 0)),              # x tile
            pl.BlockSpec((HWC, C), lambda i: (0, 0), **const_kw),   # mean mat
            pl.BlockSpec((C, HWC), lambda i: (0, 0), **const_kw),   # tile mat
            pl.BlockSpec((C, r), lambda i: (0, 0), **const_kw),     # w1
            pl.BlockSpec((1, r), lambda i: (0, 0), **const_kw),     # b1
            pl.BlockSpec((r, C), lambda i: (0, 0), **const_kw),     # w2
            pl.BlockSpec((1, C), lambda i: (0, 0), **const_kw),     # b2
        ]
        return pl.pallas_call(
            kernel,
            out_shape=out_shapes,
            grid=(steps,),
            in_specs=in_specs,
            out_specs=out_specs,
            compiler_params=params,
            cost_estimate=cost,
        )(x2, m_mat, t_mat, w1f, b1_2, w2f, b2_2)

    try:
        # Constant-index inputs never change across the grid: single-buffer
        # them so the freed VMEM goes to larger x/out tiles.
        v, out2 = _call(pl.Buffered(1))
    except Exception:
        # Fallback if this JAX build rejects buffer_count=1 for pallas_call.
        v, out2 = _call(None)

    return v.reshape(B * H, C), out2.reshape(B, H, W, C)


def channel_wise_attention_ref(x, w1, b1, w2, b2):
    """Pure-JAX reference mirroring the PyTorch forward (H == 1)."""
    C = x.shape[-1]
    fm = jnp.mean(x.astype(jnp.float32), axis=2, keepdims=True)   # [B, H, 1, C]
    h = jnp.tanh(fm @ w1.astype(jnp.float32) + b1)                # [B, H, 1, r]
    logits = h @ w2.astype(jnp.float32) + b2                      # [B, H, 1, C]
    vv = jax.nn.softmax(logits, axis=-1)                          # [B, H, 1, C]
    v = vv.reshape(-1, C)                                         # [B*H, C]
    out = (x.astype(jnp.float32) * vv).astype(x.dtype)            # broadcast W
    return v, out


if __name__ == "__main__":
    # Small shapes consistent with the module: H=1 (as used in ACRNN),
    # W=time samples, C=electrodes, r=reduction.  HW*C = 128 -> lane-dense.
    B, H, W, C, R = 16, 1, 16, 8, 4

    key = jax.random.PRNGKey(0)
    kx, k1, k2, k3, k4 = jax.random.split(key, 5)

    x = jax.random.normal(kx, (B, H, W, C), dtype=jnp.float32)
    # nn.Linear(C, r): weight [r, C]; stored transposed [C, r] for right-mult.
    w1 = 0.3 * jax.random.normal(k1, (C, R), dtype=jnp.float32)
    b1 = 0.1 * jax.random.normal(k2, (R,), dtype=jnp.float32)
    # nn.Linear(r, C): weight [C, r]; transposed -> [r, C].
    w2 = 0.3 * jax.random.normal(k3, (R, C), dtype=jnp.float32)
    b2 = 0.1 * jax.random.normal(k4, (C,), dtype=jnp.float32)

    v, out = channel_wise_attention_pallas(x, w1, b1, w2, b2)
    jax.block_until_ready((v, out))

    v_exp, out_exp = channel_wise_attention_ref(x, w1, b1, w2, b2)
    assert v.shape == (B * H, C) and out.shape == (B, H, W, C)
    # Exact softmax divide and f32 math in-kernel -> tight tolerance.
    assert jnp.allclose(v, v_exp, atol=1e-5, rtol=1e-5)
    assert jnp.allclose(out, out_exp, atol=1e-5, rtol=1e-5)

    print("KERNEL_OK")
</pallas_src>

<mosaic_0001>
module attributes {stable_mosaic.version = 11 : i64} {
  func.func @cwa_kernel(%arg0: i32, %arg1: memref<16x128xf32, #tpu.memory_space<vmem>>, %arg2: memref<128x8xf32, #tpu.memory_space<vmem>>, %arg3: memref<8x128xf32, #tpu.memory_space<vmem>>, %arg4: memref<8x4xf32, #tpu.memory_space<vmem>>, %arg5: memref<1x4xf32, #tpu.memory_space<vmem>>, %arg6: memref<4x8xf32, #tpu.memory_space<vmem>>, %arg7: memref<1x8xf32, #tpu.memory_space<vmem>>, %arg8: memref<16x8xf32, #tpu.memory_space<vmem>>, %arg9: memref<16x128xf32, #tpu.memory_space<vmem>>) attributes {dimension_semantics = [#tpu.dimension_semantics<parallel>], iteration_bounds = array<i64: 1>, scalar_prefetch = 0 : i64, scratch_operands = 0 : i64, tpu.core_type = #tpu.core_type<tc>, window_params = [{transform_indices = @transform_0, window_bounds = array<i64: 16, 128>}, {pipeline_mode = #tpu.pipeline_mode<synchronous>, transform_indices = @transform_1, window_bounds = array<i64: 128, 8>}, {pipeline_mode = #tpu.pipeline_mode<synchronous>, transform_indices = @transform_2, window_bounds = array<i64: 8, 128>}, {pipeline_mode = #tpu.pipeline_mode<synchronous>, transform_indices = @transform_3, window_bounds = array<i64: 8, 4>}, {pipeline_mode = #tpu.pipeline_mode<synchronous>, transform_indices = @transform_4, window_bounds = array<i64: 1, 4>}, {pipeline_mode = #tpu.pipeline_mode<synchronous>, transform_indices = @transform_5, window_bounds = array<i64: 4, 8>}, {pipeline_mode = #tpu.pipeline_mode<synchronous>, transform_indices = @transform_6, window_bounds = array<i64: 1, 8>}, {transform_indices = @transform_7, window_bounds = array<i64: 16, 8>}, {transform_indices = @transform_8, window_bounds = array<i64: 16, 128>}]} {
    %c0 = arith.constant 0 : index
    %c0_0 = arith.constant 0 : index
    %0 = vector.load %arg1[%c0, %c0_0] : memref<16x128xf32, #tpu.memory_space<vmem>>, vector<16x128xf32>
    %c0_1 = arith.constant 0 : index
    %c0_2 = arith.constant 0 : index
    %1 = vector.load %arg2[%c0_1, %c0_2] : memref<128x8xf32, #tpu.memory_space<vmem>>, vector<128x8xf32>
    %cst = arith.constant dense<0.000000e+00> : vector<16x8xf32>
    %2 = tpu.matmul %0, %1, %cst {dimension_numbers = #tpu.dot_dimension_numbers<[1], [0], [0], [1], [0, 0, 1, 1], [], []>} : vector<16x128xf32>, vector<128x8xf32>, vector<16x8xf32> -> vector<16x8xf32>
    %cst_3 = arith.constant 6.250000e-02 : f32
    %3 = vector.broadcast %cst_3 : f32 to vector<16x8xf32>
    %4 = arith.mulf %2, %3 : vector<16x8xf32>
    %c0_4 = arith.constant 0 : index
    %c0_5 = arith.constant 0 : index
    %5 = vector.load %arg4[%c0_4, %c0_5] : memref<8x4xf32, #tpu.memory_space<vmem>>, vector<8x4xf32>
    %cst_6 = arith.constant dense<0.000000e+00> : vector<16x4xf32>
    %6 = tpu.matmul %4, %5, %cst_6 {dimension_numbers = #tpu.dot_dimension_numbers<[1], [0], [0], [1], [0, 0, 1, 1], [], []>} : vector<16x8xf32>, vector<8x4xf32>, vector<16x4xf32> -> vector<16x4xf32>
    %c0_7 = arith.constant 0 : index
    %c0_8 = arith.constant 0 : index
    %7 = vector.load %arg5[%c0_7, %c0_8] : memref<1x4xf32, #tpu.memory_space<vmem>>, vector<1x4xf32>
    %8 = vector.broadcast %7 : vector<1x4xf32> to vector<16x4xf32>
    %9 = arith.addf %6, %8 : vector<16x4xf32>
    %10 = math.tanh %9 : vector<16x4xf32>
    %c0_9 = arith.constant 0 : index
    %c0_10 = arith.constant 0 : index
    %11 = vector.load %arg6[%c0_9, %c0_10] : memref<4x8xf32, #tpu.memory_space<vmem>>, vector<4x8xf32>
    %cst_11 = arith.constant dense<0.000000e+00> : vector<16x8xf32>
    %12 = tpu.matmul %10, %11, %cst_11 {dimension_numbers = #tpu.dot_dimension_numbers<[1], [0], [0], [1], [0, 0, 1, 1], [], []>} : vector<16x4xf32>, vector<4x8xf32>, vector<16x8xf32> -> vector<16x8xf32>
    %c0_12 = arith.constant 0 : index
    %c0_13 = arith.constant 0 : index
    %13 = vector.load %arg7[%c0_12, %c0_13] : memref<1x8xf32, #tpu.memory_space<vmem>>, vector<1x8xf32>
    %14 = vector.broadcast %13 : vector<1x8xf32> to vector<16x8xf32>
    %15 = arith.addf %12, %14 : vector<16x8xf32>
    %cst_14 = arith.constant dense<0xFF800000> : vector<16xf32>
    %16 = vector.multi_reduction <maximumf>, %15, %cst_14 [1] : vector<16x8xf32> to vector<16xf32>
    %17 = vector.shape_cast %16 : vector<16xf32> to vector<16x1xf32>
    %18 = vector.broadcast %17 : vector<16x1xf32> to vector<16x8xf32>
    %19 = arith.subf %15, %18 : vector<16x8xf32>
    %20 = math.exp %19 : vector<16x8xf32>
    %cst_15 = arith.constant dense<0.000000e+00> : vector<16xf32>
    %21 = vector.multi_reduction <add>, %20, %cst_15 [1] : vector<16x8xf32> to vector<16xf32>
    %22 = vector.shape_cast %21 : vector<16xf32> to vector<16x1xf32>
    %23 = vector.broadcast %22 : vector<16x1xf32> to vector<16x8xf32>
    %24 = arith.divf %20, %23 : vector<16x8xf32>
    %c0_16 = arith.constant 0 : index
    %c0_17 = arith.constant 0 : index
    %25 = vector.load %arg8[%c0_16, %c0_17] : memref<16x8xf32, #tpu.memory_space<vmem>>, vector<16x8xf32>
    tpu.vector_store %arg8[%c0_16, %c0_17], %24 {strides = array<i32>} : memref<16x8xf32, #tpu.memory_space<vmem>>, vector<16x8xf32>,
    %c0_18 = arith.constant 0 : index
    %c0_19 = arith.constant 0 : index
    %26 = vector.load %arg3[%c0_18, %c0_19] : memref<8x128xf32, #tpu.memory_space<vmem>>, vector<8x128xf32>
    %cst_20 = arith.constant dense<0.000000e+00> : vector<16x128xf32>
    %27 = tpu.matmul %24, %26, %cst_20 {dimension_numbers = #tpu.dot_dimension_numbers<[1], [0], [0], [1], [0, 0, 1, 1], [], []>} : vector<16x8xf32>, vector<8x128xf32>, vector<16x128xf32> -> vector<16x128xf32>
    %c0_21 = arith.constant 0 : index
    %c0_22 = arith.constant 0 : index
    %28 = vector.load %arg1[%c0_21, %c0_22] : memref<16x128xf32, #tpu.memory_space<vmem>>, vector<16x128xf32>
    %29 = arith.mulf %28, %27 : vector<16x128xf32>
    %c0_23 = arith.constant 0 : index
    %c0_24 = arith.constant 0 : index
    %30 = vector.load %arg9[%c0_23, %c0_24] : memref<16x128xf32, #tpu.memory_space<vmem>>, vector<16x128xf32>
    tpu.vector_store %arg9[%c0_23, %c0_24], %29 {strides = array<i32>} : memref<16x128xf32, #tpu.memory_space<vmem>>, vector<16x128xf32>,
    return
  }
  func.func @transform_0(%arg0: i32) -> (i32, i32) {
    %c0_i32 = arith.constant 0 : i32
    %c0_i32_0 = arith.constant 0 : i32
    return %arg0, %c0_i32 : i32, i32
  }
  func.func @transform_1(%arg0: i32) -> (i32, i32) {
    %c0_i32 = arith.constant 0 : i32
    %c0_i32_0 = arith.constant 0 : i32
    %c0_i32_1 = arith.constant 0 : i32
    return %c0_i32, %c0_i32_0 : i32, i32
  }
  func.func @transform_2(%arg0: i32) -> (i32, i32) {
    %c0_i32 = arith.constant 0 : i32
    %c0_i32_0 = arith.constant 0 : i32
    %c0_i32_1 = arith.constant 0 : i32
    return %c0_i32, %c0_i32_0 : i32, i32
  }
  func.func @transform_3(%arg0: i32) -> (i32, i32) {
    %c0_i32 = arith.constant 0 : i32
    %c0_i32_0 = arith.constant 0 : i32
    %c0_i32_1 = arith.constant 0 : i32
    return %c0_i32, %c0_i32_0 : i32, i32
  }
  func.func @transform_4(%arg0: i32) -> (i32, i32) {
    %c0_i32 = arith.constant 0 : i32
    %c0_i32_0 = arith.constant 0 : i32
    %c0_i32_1 = arith.constant 0 : i32
    return %c0_i32, %c0_i32_0 : i32, i32
  }
  func.func @transform_5(%arg0: i32) -> (i32, i32) {
    %c0_i32 = arith.constant 0 : i32
    %c0_i32_0 = arith.constant 0 : i32
    %c0_i32_1 = arith.constant 0 : i32
    return %c0_i32, %c0_i32_0 : i32, i32
  }
  func.func @transform_6(%arg0: i32) -> (i32, i32) {
    %c0_i32 = arith.constant 0 : i32
    %c0_i32_0 = arith.constant 0 : i32
    %c0_i32_1 = arith.constant 0 : i32
    return %c0_i32, %c0_i32_0 : i32, i32
  }
  func.func @transform_7(%arg0: i32) -> (i32, i32) {
    %c0_i32 = arith.constant 0 : i32
    %c0_i32_0 = arith.constant 0 : i32
    return %arg0, %c0_i32 : i32, i32
  }
  func.func @transform_8(%arg0: i32) -> (i32, i32) {
    %c0_i32 = arith.constant 0 : i32
    %c0_i32_0 = arith.constant 0 : i32
    return %arg0, %c0_i32 : i32, i32
  }
}

module attributes {stable_mosaic.version = 11 : i64} {
  func.func @cwa_kernel(%arg0: i32, %arg1: memref<16x128xf32, #tpu.memory_space<vmem>>, %arg2: memref<128x8xf32, #tpu.memory_space<vmem>>, %arg3: memref<8x128xf32, #tpu.memory_space<vmem>>, %arg4: memref<8x4xf32, #tpu.memory_space<vmem>>, %arg5: memref<1x4xf32, #tpu.memory_space<vmem>>, %arg6: memref<4x8xf32, #tpu.memory_space<vmem>>, %arg7: memref<1x8xf32, #tpu.memory_space<vmem>>, %arg8: memref<16x8xf32, #tpu.memory_space<vmem>>, %arg9: memref<16x128xf32, #tpu.memory_space<vmem>>) attributes {dimension_semantics = [#tpu.dimension_semantics<parallel>], iteration_bounds = array<i64: 1>, scalar_prefetch = 0 : i64, scratch_operands = 0 : i64, tpu.core_type = #tpu.core_type<tc>, window_params = [{transform_indices = @transform_0, window_bounds = array<i64: 16, 128>}, {pipeline_mode = #tpu.pipeline_mode<synchronous>, transform_indices = @transform_1, window_bounds = array<i64: 128, 8>}, {pipeline_mode = #tpu.pipeline_mode<synchronous>, transform_indices = @transform_2, window_bounds = array<i64: 8, 128>}, {pipeline_mode = #tpu.pipeline_mode<synchronous>, transform_indices = @transform_3, window_bounds = array<i64: 8, 4>}, {pipeline_mode = #tpu.pipeline_mode<synchronous>, transform_indices = @transform_4, window_bounds = array<i64: 1, 4>}, {pipeline_mode = #tpu.pipeline_mode<synchronous>, transform_indices = @transform_5, window_bounds = array<i64: 4, 8>}, {pipeline_mode = #tpu.pipeline_mode<synchronous>, transform_indices = @transform_6, window_bounds = array<i64: 1, 8>}, {transform_indices = @transform_7, window_bounds = array<i64: 16, 8>}, {transform_indices = @transform_8, window_bounds = array<i64: 16, 128>}]} {
    %c0 = arith.constant 0 : index
    %c0_0 = arith.constant 0 : index
    %0 = vector.load %arg1[%c0, %c0_0] : memref<16x128xf32, #tpu.memory_space<vmem>>, vector<16x128xf32>
    %c0_1 = arith.constant 0 : index
    %c0_2 = arith.constant 0 : index
    %1 = vector.load %arg2[%c0_1, %c0_2] : memref<128x8xf32, #tpu.memory_space<vmem>>, vector<128x8xf32>
    %cst = arith.constant dense<0.000000e+00> : vector<16x8xf32>
    %2 = tpu.matmul %0, %1, %cst {dimension_numbers = #tpu.dot_dimension_numbers<[1], [0], [0], [1], [0, 0, 1, 1], [], []>} : vector<16x128xf32>, vector<128x8xf32>, vector<16x8xf32> -> vector<16x8xf32>
    %cst_3 = arith.constant 6.250000e-02 : f32
    %3 = vector.broadcast %cst_3 : f32 to vector<16x8xf32>
    %4 = arith.mulf %2, %3 : vector<16x8xf32>
    %c0_4 = arith.constant 0 : index
    %c0_5 = arith.constant 0 : index
    %5 = vector.load %arg4[%c0_4, %c0_5] : memref<8x4xf32, #tpu.memory_space<vmem>>, vector<8x4xf32>
    %cst_6 = arith.constant dense<0.000000e+00> : vector<16x4xf32>
    %6 = tpu.matmul %4, %5, %cst_6 {dimension_numbers = #tpu.dot_dimension_numbers<[1], [0], [0], [1], [0, 0, 1, 1], [], []>} : vector<16x8xf32>, vector<8x4xf32>, vector<16x4xf32> -> vector<16x4xf32>
    %c0_7 = arith.constant 0 : index
    %c0_8 = arith.constant 0 : index
    %7 = vector.load %arg5[%c0_7, %c0_8] : memref<1x4xf32, #tpu.memory_space<vmem>>, vector<1x4xf32>
    %8 = vector.broadcast %7 : vector<1x4xf32> to vector<16x4xf32>
    %9 = arith.addf %6, %8 : vector<16x4xf32>
    %10 = math.tanh %9 : vector<16x4xf32>
    %c0_9 = arith.constant 0 : index
    %c0_10 = arith.constant 0 : index
    %11 = vector.load %arg6[%c0_9, %c0_10] : memref<4x8xf32, #tpu.memory_space<vmem>>, vector<4x8xf32>
    %cst_11 = arith.constant dense<0.000000e+00> : vector<16x8xf32>
    %12 = tpu.matmul %10, %11, %cst_11 {dimension_numbers = #tpu.dot_dimension_numbers<[1], [0], [0], [1], [0, 0, 1, 1], [], []>} : vector<16x4xf32>, vector<4x8xf32>, vector<16x8xf32> -> vector<16x8xf32>
    %c0_12 = arith.constant 0 : index
    %c0_13 = arith.constant 0 : index
    %13 = vector.load %arg7[%c0_12, %c0_13] : memref<1x8xf32, #tpu.memory_space<vmem>>, vector<1x8xf32>
    %14 = vector.broadcast %13 : vector<1x8xf32> to vector<16x8xf32>
    %15 = arith.addf %12, %14 : vector<16x8xf32>
    %cst_14 = arith.constant dense<0xFF800000> : vector<16xf32>
    %16 = vector.multi_reduction <maximumf>, %15, %cst_14 [1] : vector<16x8xf32> to vector<16xf32>
    %17 = vector.shape_cast %16 : vector<16xf32> to vector<16x1xf32>
    %18 = vector.broadcast %17 : vector<16x1xf32> to vector<16x8xf32>
    %19 = arith.subf %15, %18 : vector<16x8xf32>
    %20 = math.exp %19 : vector<16x8xf32>
    %cst_15 = arith.constant dense<0.000000e+00> : vector<16xf32>
    %21 = vector.multi_reduction <add>, %20, %cst_15 [1] : vector<16x8xf32> to vector<16xf32>
    %22 = vector.shape_cast %21 : vector<16xf32> to vector<16x1xf32>
    %23 = vector.broadcast %22 : vector<16x1xf32> to vector<16x8xf32>
    %24 = arith.divf %20, %23 : vector<16x8xf32>
    %c0_16 = arith.constant 0 : index
    %c0_17 = arith.constant 0 : index
    %25 = vector.load %arg8[%c0_16, %c0_17] : memref<16x8xf32, #tpu.memory_space<vmem>>, vector<16x8xf32>
    tpu.vector_store %arg8[%c0_16, %c0_17], %24 {strides = array<i32>} : memref<16x8xf32, #tpu.memory_space<vmem>>, vector<16x8xf32>,
    %c0_18 = arith.constant 0 : index
    %c0_19 = arith.constant 0 : index
    %26 = vector.load %arg3[%c0_18, %c0_19] : memref<8x128xf32, #tpu.memory_space<vmem>>, vector<8x128xf32>
    %cst_20 = arith.constant dense<0.000000e+00> : vector<16x128xf32>
    %27 = tpu.matmul %24, %26, %cst_20 {dimension_numbers = #tpu.dot_dimension_numbers<[1], [0], [0], [1], [0, 0, 1, 1], [], []>} : vector<16x8xf32>, vector<8x128xf32>, vector<16x128xf32> -> vector<16x128xf32>
    %c0_21 = arith.constant 0 : index
    %c0_22 = arith.constant 0 : index
    %28 = vector.load %arg1[%c0_21, %c0_22] : memref<16x128xf32, #tpu.memory_space<vmem>>, vector<16x128xf32>
    %29 = arith.mulf %28, %27 : vector<16x128xf32>
    %c0_23 = arith.constant 0 : index
    %c0_24 = arith.constant 0 : index
    %30 = vector.load %arg9[%c0_23, %c0_24] : memref<16x128xf32, #tpu.memory_space<vmem>>, vector<16x128xf32>
    tpu.vector_store %arg9[%c0_23, %c0_24], %29 {strides = array<i32>} : memref<16x128xf32, #tpu.memory_space<vmem>>, vector<16x128xf32>,
    return
  }
  func.func @transform_0(%arg0: i32) -> (i32, i32) {
    %c0_i32 = arith.constant 0 : i32
    %c0_i32_0 = arith.constant 0 : i32
    return %arg0, %c0_i32 : i32, i32
  }
  func.func @transform_1(%arg0: i32) -> (i32, i32) {
    %c0_i32 = arith.constant 0 : i32
    %c0_i32_0 = arith.constant 0 : i32
    %c0_i32_1 = arith.constant 0 : i32
    return %c0_i32, %c0_i32_0 : i32, i32
  }
  func.func @transform_2(%arg0: i32) -> (i32, i32) {
    %c0_i32 = arith.constant 0 : i32
    %c0_i32_0 = arith.constant 0 : i32
    %c0_i32_1 = arith.constant 0 : i32
    return %c0_i32, %c0_i32_0 : i32, i32
  }
  func.func @transform_3(%arg0: i32) -> (i32, i32) {
    %c0_i32 = arith.constant 0 : i32
    %c0_i32_0 = arith.constant 0 : i32
    %c0_i32_1 = arith.constant 0 : i32
    return %c0_i32, %c0_i32_0 : i32, i32
  }
  func.func @transform_4(%arg0: i32) -> (i32, i32) {
    %c0_i32 = arith.constant 0 : i32
    %c0_i32_0 = arith.constant 0 : i32
    %c0_i32_1 = arith.constant 0 : i32
    return %c0_i32, %c0_i32_0 : i32, i32
  }
  func.func @transform_5(%arg0: i32) -> (i32, i32) {
    %c0_i32 = arith.constant 0 : i32
    %c0_i32_0 = arith.constant 0 : i32
    %c0_i32_1 = arith.constant 0 : i32
    return %c0_i32, %c0_i32_0 : i32, i32
  }
  func.func @transform_6(%arg0: i32) -> (i32, i32) {
    %c0_i32 = arith.constant 0 : i32
    %c0_i32_0 = arith.constant 0 : i32
    %c0_i32_1 = arith.constant 0 : i32
    return %c0_i32, %c0_i32_0 : i32, i32
  }
  func.func @transform_7(%arg0: i32) -> (i32, i32) {
    %c0_i32 = arith.constant 0 : i32
    %c0_i32_0 = arith.constant 0 : i32
    return %arg0, %c0_i32 : i32, i32
  }
  func.func @transform_8(%arg0: i32) -> (i32, i32) {
    %c0_i32 = arith.constant 0 : i32
    %c0_i32_0 = arith.constant 0 : i32
    return %arg0, %c0_i32 : i32, i32
  }
}

</mosaic_0001>

<llo_original>
// kernel: tpu_custom_call.1
$region0: #{tpu_custom_call.1}
  #allocation0 [shape = 'u32[]', space=smem, size = 0x4, offset = 0x4, fixed_abs, tag = 'smem constant byte address 0x4 - core index']
  #allocation1 [shape = 'u32[144,128]{1,0:T(1,128)}', space=vmem, size = 0x12000, scoped, tag = 'internal scratch']
  %s0 = inlined_call_operand.vmem [shape: f32[16,128], index: 0, kind: input, shape index: {}]
  %s1 = inlined_call_operand.vmem [shape: f32[128,8], index: 1, kind: input, shape index: {}]
  %s2 = inlined_call_operand.vmem [shape: f32[8,128], index: 2, kind: input, shape index: {}]
  %s3 = inlined_call_operand.vmem [shape: f32[8,4], index: 3, kind: input, shape index: {}]
  %s4 = inlined_call_operand.vmem [shape: f32[1,4], index: 4, kind: input, shape index: {}]
  %s5 = inlined_call_operand.vmem [shape: f32[4,8], index: 5, kind: input, shape index: {}]
  %s6 = inlined_call_operand.vmem [shape: f32[1,8], index: 6, kind: input, shape index: {}]
  %s7 = inlined_call_operand.vmem [shape: f32[16,8], index: 7, kind: output, shape index: {0}]
  %s8 = inlined_call_operand.hbm [shape: f32[16,128], index: 8, kind: output, shape index: {1}]
  %9 = xla_tuple %s7, %s8
  %s10 = sld [smem:[#allocation0]]
  $region46: #{tpu_custom_call.1} parent=0
    _
  %s12 = ssub.s32 1, %s10
  %s13 = scalar_select 0, %s12, %s10
  $region1: #{tpu_custom_call.1} parent=0
    #allocation2 [shape = 'u8[8192]{0}', space=vmem, size = 0x2000, scoped, tag = 'output window, operand 1, single buffered']
    #allocation3 [shape = 's32[1]{0}', space=sflag, size = 0x4, scoped, tag = 'scoped memory for tpu_custom_call.1']
    %14 = vsyncpa [#allocation3], 0
    // Predicated region
    $region2: #{tpu_custom_call.1} parent=1 // pred_check
      _
    $region3: #{tpu_custom_call.1} parent=1 // pred_check_branch
      %16 = sbr.rel (0) target = $region5
    $region4: #{tpu_custom_call.1} parent=1 // pred_region
      _
    $region5: #{tpu_custom_call.1} parent=1 // pred_fallthru
      _
    // Predicated region
    $region6: #{tpu_custom_call.1} parent=1 // pred_check
      _
    $region7: #{tpu_custom_call.1} parent=1 // pred_check_branch
      %18 = sbr.rel (0) target = $region9
    $region8: #{tpu_custom_call.1} parent=1 // pred_region
      _
    $region9: #{tpu_custom_call.1} parent=1 // pred_fallthru
      _
    // Predicated region
    $region10: #{tpu_custom_call.1} parent=1 // pred_check
      _
    $region11: #{tpu_custom_call.1} parent=1 // pred_check_branch
      %20 = sbr.rel (0) target = $region13
    $region12: #{tpu_custom_call.1} parent=1 // pred_region
      _
    $region13: #{tpu_custom_call.1} parent=1 // pred_fallthru
      _
    // Predicated region
    $region14: #{tpu_custom_call.1} parent=1 // pred_check
      _
    $region15: #{tpu_custom_call.1} parent=1 // pred_check_branch
      %22 = sbr.rel (0) target = $region17
    $region16: #{tpu_custom_call.1} parent=1 // pred_region
      _
    $region17: #{tpu_custom_call.1} parent=1 // pred_fallthru
      _
    // Predicated region
    $region18: #{tpu_custom_call.1} parent=1 // pred_check
      _
    $region19: #{tpu_custom_call.1} parent=1 // pred_check_branch
      %24 = sbr.rel (0) target = $region21
    $region20: #{tpu_custom_call.1} parent=1 // pred_region
      _
    $region21: #{tpu_custom_call.1} parent=1 // pred_fallthru
      _
    // Predicated region
    $region22: #{tpu_custom_call.1} parent=1 // pred_check
      _
    $region23: #{tpu_custom_call.1} parent=1 // pred_check_branch
      %26 = sbr.rel (0) target = $region25
    $region24: #{tpu_custom_call.1} parent=1 // pred_region
      _
    $region25: #{tpu_custom_call.1} parent=1 // pred_fallthru
      _
    // Predicated region
    $region26: #{tpu_custom_call.1} parent=1 // pred_check
      _
    $region27: #{tpu_custom_call.1} parent=1 // pred_check_branch
      %28 = sbr.rel (0) target = $region29
    $region28: #{tpu_custom_call.1} parent=1 // pred_region
      _
    $region29: #{tpu_custom_call.1} parent=1 // pred_fallthru
      _
    %v29 = vld [vmem:[%s0] sm:$0xff]
    %v30 = vld [vmem:[%s0 + $0x8] sm:$0xff]
    %v31 = vld [vmem:[%s1] sm:$0xff]
    %v32 = vld [vmem:[%s1 + $0x8] sm:$0xff]
    %v33 = vld [vmem:[%s1 + $0x10] sm:$0xff]
    %v34 = vld [vmem:[%s1 + $0x18] sm:$0xff]
    %v35 = vld [vmem:[%s1 + $0x20] sm:$0xff]
    %v36 = vld [vmem:[%s1 + $0x28] sm:$0xff]
    %v37 = vld [vmem:[%s1 + $0x30] sm:$0xff]
    %v38 = vld [vmem:[%s1 + $0x38] sm:$0xff]
    %v39 = vld [vmem:[%s1 + $0x40] sm:$0xff]
    %v40 = vld [vmem:[%s1 + $0x48] sm:$0xff]
    %v41 = vld [vmem:[%s1 + $0x50] sm:$0xff]
    %v42 = vld [vmem:[%s1 + $0x58] sm:$0xff]
    %v43 = vld [vmem:[%s1 + $0x60] sm:$0xff]
    %v44 = vld [vmem:[%s1 + $0x68] sm:$0xff]
    %v45 = vld [vmem:[%s1 + $0x70] sm:$0xff]
    %v46 = vld [vmem:[%s1 + $0x78] sm:$0xff]
    %47 = vmatprep.subr.mxu0 0.0
    %48 = vmatpush1.msra.mxu0 %v31
    %49 = vmatprep.subr.mxu0 0.0
    %50 = vmatpush1.msra.mxu0 %v32
    %51 = vmatprep.subr.mxu0 0.0
    %52 = vmatpush1.msra.mxu0 %v33
    %53 = vmatprep.subr.mxu0 0.0
    %54 = vmatpush1.msra.mxu0 %v34
    %55 = vmatprep.subr.mxu0 0.0
    %56 = vmatpush1.msra.mxu0 %v35
    %57 = vmatprep.subr.mxu0 0.0
    %58 = vmatpush1.msra.mxu0 %v36
    %59 = vmatprep.subr.mxu0 0.0
    %60 = vmatpush1.msra.mxu0 %v37
    %61 = vmatprep.subr.mxu0 0.0
    %62 = vmatpush1.msra.mxu0 %v38
    %63 = vmatprep.subr.mxu0 0.0
    %64 = vmatpush1.msra.mxu0 %v39
    %65 = vmatprep.subr.mxu0 0.0
    %66 = vmatpush1.msra.mxu0 %v40
    %67 = vmatprep.subr.mxu0 0.0
    %68 = vmatpush1.msra.mxu0 %v41
    %69 = vmatprep.subr.mxu0 0.0
    %70 = vmatpush1.msra.mxu0 %v42
    %71 = vmatprep.subr.mxu0 0.0
    %72 = vmatpush1.msra.mxu0 %v43
    %73 = vmatprep.subr.mxu0 0.0
    %74 = vmatpush1.msra.mxu0 %v44
    %75 = vmatprep.subr.mxu0 0.0
    %76 = vmatpush1.msra.mxu0 %v45
    %77 = vmatprep.subr.mxu0 0.0
    %78 = vmatpush1.msra.mxu0 %v46
    %79 = vmatprep.subr.mxu0 0.0
    %80 = vmatpush1.msra.mxu0 0.0
    %81 = vmatprep.subr.mxu0 0.0
    %82 = vmatpush1.msra.mxu0 0.0
    %83 = vmatprep.subr.mxu0 0.0
    %84 = vmatpush1.msra.mxu0 0.0
    %85 = vmatprep.subr.mxu0 0.0
    %86 = vmatpush1.msra.mxu0 0.0
    %87 = vmatprep.subr.mxu0 0.0
    %88 = vmatpush1.msra.mxu0 0.0
    %89 = vmatprep.subr.mxu0 0.0
    %90 = vmatpush1.msra.mxu0 0.0
    %91 = vmatprep.subr.mxu0 0.0
    %92 = vmatpush1.msra.mxu0 0.0
    %93 = vmatprep.subr.mxu0 0.0
    %94 = vmatpush1.msra.mxu0 0.0
    %95 = vmatprep.subr.mxu0 0.0
    %96 = vmatpush1.msra.mxu0 0.0
    %97 = vmatprep.subr.mxu0 0.0
    %98 = vmatpush1.msra.mxu0 0.0
    %99 = vmatprep.subr.mxu0 0.0
    %100 = vmatpush1.msra.mxu0 0.0
    %101 = vmatprep.subr.mxu0 0.0
    %102 = vmatpush1.msra.mxu0 0.0
    %103 = vmatprep.subr.mxu0 0.0
    %104 = vmatpush1.msra.mxu0 0.0
    %105 = vmatprep.subr.mxu0 0.0
    %106 = vmatpush1.msra.mxu0 0.0
    %107 = vmatprep.subr.mxu0 0.0
    %108 = vmatpush1.msra.mxu0 0.0
    %109 = vmatprep.subr.mxu0 0.0
    %110 = vmatpush1.msra.mxu0 0.0
    %111 = vmatprep.mubr.f32.mxu0 0.0
    %112 = vmatmul.mubr.f32.gmra.mrb[0].mxu0 %v29
    %v113 = vpop.f32.mrb[0].mxu0
    %v114 = vadd.f32 0.0, %v113
    %v115 = vpop.f32.mrb[0].mxu0
    %116 = vmatprep.mubr.f32.mxu0 0.0
    %117 = vmatmul.mubr.f32.gmra.mrb[0].mxu0 %v30
    %v118 = vpop.f32.mrb[0].mxu0
    %v119 = vadd.f32 0.0, %v118
    %v120 = vpop.f32.mrb[0].mxu0
    %121 = vdwg.mxu0
    %v122 = vmul.f32 %v114, 0.0625
    %v123 = vmul.f32 %v119, 0.0625
    %v124 = vld [vmem:[%s3] sm:$0xff]
    %v125 = vld [vmem:[%s4] sm:$0x1]
    %v127 = vlaneseq
    %v128 = vshrl.u32 %v127, 7
    %v129 = vsub.s32 0, %v128
    %v130 = vrot.slane %v125, %v129
    %vm132 = vcmask 64512
    %v134 = vsel %vm132, %v122, 0
    %v137 = vsel %vm132, %v123, 0
    %139 = vmatprep.subr.mxu0 0.0
    %140 = vmatpush1.msra.mxu0 %v124
    %141 = vmatprep.subr.mxu0 0.0
    %142 = vmatpush1.msra.mxu0 0.0
    %143 = vmatprep.subr.mxu0 0.0
    %144 = vmatpush1.msra.mxu0 0.0
    %145 = vmatprep.subr.mxu0 0.0
    %146 = vmatpush1.msra.mxu0 0.0
    %147 = vmatprep.subr.mxu0 0.0
    %148 = vmatpush1.msra.mxu0 0.0
    %149 = vmatprep.subr.mxu0 0.0
    %150 = vmatpush1.msra.mxu0 0.0
    %151 = vmatprep.subr.mxu0 0.0
    %152 = vmatpush1.msra.mxu0 0.0
    %153 = vmatprep.subr.mxu0 0.0
    %154 = vmatpush1.msra.mxu0 0.0
    %155 = vmatprep.subr.mxu0 0.0
    %156 = vmatpush1.msra.mxu0 0.0
    %157 = vmatprep.subr.mxu0 0.0
    %158 = vmatpush1.msra.mxu0 0.0
    %159 = vmatprep.subr.mxu0 0.0
    %160 = vmatpush1.msra.mxu0 0.0
    %161 = vmatprep.subr.mxu0 0.0
    %162 = vmatpush1.msra.mxu0 0.0
    %163 = vmatprep.subr.mxu0 0.0
    %164 = vmatpush1.msra.mxu0 0.0
    %165 = vmatprep.subr.mxu0 0.0
    %166 = vmatpush1.msra.mxu0 0.0
    %167 = vmatprep.subr.mxu0 0.0
    %168 = vmatpush1.msra.mxu0 0.0
    %169 = vmatprep.subr.mxu0 0.0
    %170 = vmatpush1.msra.mxu0 0.0
    %171 = vmatprep.subr.mxu0 0.0
    %172 = vmatpush1.msra.mxu0 0.0
    %173 = vmatprep.subr.mxu0 0.0
    %174 = vmatpush1.msra.mxu0 0.0
    %175 = vmatprep.subr.mxu0 0.0
    %176 = vmatpush1.msra.mxu0 0.0
    %177 = vmatprep.subr.mxu0 0.0
    %178 = vmatpush1.msra.mxu0 0.0
    %179 = vmatprep.subr.mxu0 0.0
    %180 = vmatpush1.msra.mxu0 0.0
    %181 = vmatprep.subr.mxu0 0.0
    %182 = vmatpush1.msra.mxu0 0.0
    %183 = vmatprep.subr.mxu0 0.0
    %184 = vmatpush1.msra.mxu0 0.0
    %185 = vmatprep.subr.mxu0 0.0
    %186 = vmatpush1.msra.mxu0 0.0
    %187 = vmatprep.subr.mxu0 0.0
    %188 = vmatpush1.msra.mxu0 0.0
    %189 = vmatprep.subr.mxu0 0.0
    %190 = vmatpush1.msra.mxu0 0.0
    %191 = vmatprep.subr.mxu0 0.0
    %192 = vmatpush1.msra.mxu0 0.0
    %193 = vmatprep.subr.mxu0 0.0
    %194 = vmatpush1.msra.mxu0 0.0
    %195 = vmatprep.subr.mxu0 0.0
    %196 = vmatpush1.msra.mxu0 0.0
    %197 = vmatprep.subr.mxu0 0.0
    %198 = vmatpush1.msra.mxu0 0.0
    %199 = vmatprep.subr.mxu0 0.0
    %200 = vmatpush1.msra.mxu0 0.0
    %201 = vmatprep.subr.mxu0 0.0
    %202 = vmatpush1.msra.mxu0 0.0
    %203 = vmatprep.mubr.f32.mxu0 0.0
    %204 = vmatmul.mubr.f32.gmra.mrb[0].mxu0 %v134
    %v205 = vpop.f32.mrb[0].mxu0
    %v206 = vadd.f32 %v130, %v205
    %v207 = vpop.f32.mrb[0].mxu0
    %208 = vmatprep.mubr.f32.mxu0 0.0
    %209 = vmatmul.mubr.f32.gmra.mrb[0].mxu0 %v137
    %v210 = vpop.f32.mrb[0].mxu0
    %v211 = vadd.f32 %v130, %v210
    %v212 = vpop.f32.mrb[0].mxu0
    %213 = vdwg.mxu0
    %v214 = vtanh.pop %v206
    %v215 = vtanh.pop %v211
    %v216 = vld [vmem:[%s5] sm:$0xf]
    %v217 = vld [vmem:[%s6] sm:$0x1]
    %v219 = vlaneseq
    %v220 = vshrl.u32 %v219, 7
    %v221 = vsub.s32 0, %v220
    %v222 = vrot.slane %v217, %v221
    %vm224 = vcmask 31744
    %v226 = vsel %vm224, %v214, 0
    %v229 = vsel %vm224, %v215, 0
    %vm231 = vcmask 1043456
    %v233 = vsel %vm231, %v216, 0
    %235 = vmatprep.subr.mxu0 0.0
    %236 = vmatpush1.msra.mxu0 %v233
    %237 = vmatprep.subr.mxu0 0.0
    %238 = vmatpush1.msra.mxu0 0.0
    %239 = vmatprep.subr.mxu0 0.0
    %240 = vmatpush1.msra.mxu0 0.0
    %241 = vmatprep.subr.mxu0 0.0
    %242 = vmatpush1.msra.mxu0 0.0
    %243 = vmatprep.subr.mxu0 0.0
    %244 = vmatpush1.msra.mxu0 0.0
    %245 = vmatprep.subr.mxu0 0.0
    %246 = vmatpush1.msra.mxu0 0.0
    %247 = vmatprep.subr.mxu0 0.0
    %248 = vmatpush1.msra.mxu0 0.0
    %249 = vmatprep.subr.mxu0 0.0
    %250 = vmatpush1.msra.mxu0 0.0
    %251 = vmatprep.subr.mxu0 0.0
    %252 = vmatpush1.msra.mxu0 0.0
    %253 = vmatprep.subr.mxu0 0.0
    %254 = vmatpush1.msra.mxu0 0.0
    %255 = vmatprep.subr.mxu0 0.0
    %256 = vmatpush1.msra.mxu0 0.0
    %257 = vmatprep.subr.mxu0 0.0
    %258 = vmatpush1.msra.mxu0 0.0
    %259 = vmatprep.subr.mxu0 0.0
    %260 = vmatpush1.msra.mxu0 0.0
    %261 = vmatprep.subr.mxu0 0.0
    %262 = vmatpush1.msra.mxu0 0.0
    %263 = vmatprep.subr.mxu0 0.0
    %264 = vmatpush1.msra.mxu0 0.0
    %265 = vmatprep.subr.mxu0 0.0
    %266 = vmatpush1.msra.mxu0 0.0
    %267 = vmatprep.subr.mxu0 0.0
    %268 = vmatpush1.msra.mxu0 0.0
    %269 = vmatprep.subr.mxu0 0.0
    %270 = vmatpush1.msra.mxu0 0.0
    %271 = vmatprep.subr.mxu0 0.0
    %272 = vmatpush1.msra.mxu0 0.0
    %273 = vmatprep.subr.mxu0 0.0
    %274 = vmatpush1.msra.mxu0 0.0
    %275 = vmatprep.subr.mxu0 0.0
    %276 = vmatpush1.msra.mxu0 0.0
    %277 = vmatprep.subr.mxu0 0.0
    %278 = vmatpush1.msra.mxu0 0.0
    %279 = vmatprep.subr.mxu0 0.0
    %280 = vmatpush1.msra.mxu0 0.0
    %281 = vmatprep.subr.mxu0 0.0
    %282 = vmatpush1.msra.mxu0 0.0
    %283 = vmatprep.subr.mxu0 0.0
    %284 = vmatpush1.msra.mxu0 0.0
    %285 = vmatprep.subr.mxu0 0.0
    %286 = vmatpush1.msra.mxu0 0.0
    %287 = vmatprep.subr.mxu0 0.0
    %288 = vmatpush1.msra.mxu0 0.0
    %289 = vmatprep.subr.mxu0 0.0
    %290 = vmatpush1.msra.mxu0 0.0
    %291 = vmatprep.subr.mxu0 0.0
    %292 = vmatpush1.msra.mxu0 0.0
    %293 = vmatprep.subr.mxu0 0.0
    %294 = vmatpush1.msra.mxu0 0.0
    %295 = vmatprep.subr.mxu0 0.0
    %296 = vmatpush1.msra.mxu0 0.0
    %297 = vmatprep.subr.mxu0 0.0
    %298 = vmatpush1.msra.mxu0 0.0
    %299 = vmatprep.mubr.f32.mxu0 0.0
    %300 = vmatmul.mubr.f32.gmra.mrb[0].mxu0 %v226
    %v301 = vpop.f32.mrb[0].mxu0
    %v302 = vadd.f32 %v222, %v301
    %v303 = vpop.f32.mrb[0].mxu0
    %304 = vmatprep.mubr.f32.mxu0 0.0
    %305 = vmatmul.mubr.f32.gmra.mrb[0].mxu0 %v229
    %v306 = vpop.f32.mrb[0].mxu0
    %v307 = vadd.f32 %v222, %v306
    %v308 = vpop.f32.mrb[0].mxu0
    %309 = vdwg.mxu0
    %v310 = vsel %vm132, %v302, -inf
    %311 = vmax.xlane.f32.xlu0 %v310
    %v312 = vpop.xlane.xlu0 %311
    %v313 = vsel %vm132, %v307, -inf
    %314 = vmax.xlane.f32.xlu0 %v313
    %v315 = vpop.xlane.xlu0 %314
    %v316 = vsub.f32 %v302, %v312
    %v317 = vsub.f32 %v307, %v315
    %v318 = vmul.f32 %v316, 1.442695
    %v319 = vpow.pop %v318
    %v320 = vmul.f32 %v317, 1.442695
    %v321 = vpow.pop %v320
    %v322 = vsel %vm132, %v319, 0.0
    %323 = vadd.xlane.f32.xlu0 %v322
    %v324 = vpop.xlane.xlu0 %323
    %v325 = vsel %vm132, %v321, 0.0
    %326 = vadd.xlane.f32.xlu0 %v325
    %v327 = vpop.xlane.xlu0 %326
    %v328 = vrcp.pop %v324
    %v329 = vmul.f32 %v319, %v328
    %v330 = vrcp.pop %v327
    %v331 = vmul.f32 %v321, %v330
    %332 = vst.msk [vmem:[%s7] sm:$0xff] %vm132, %v329
    %333 = vst.msk [vmem:[%s7 + $0x8] sm:$0xff] %vm132, %v331
    %v334 = vld [vmem:[%s2] sm:$0xff]
    %v336 = vsel %vm132, %v329, 0
    %v339 = vsel %vm132, %v331, 0
    %341 = vmatprep.subr.mxu0 0.0
    %342 = vmatpush1.msra.mxu0 %v334
    %343 = vmatprep.subr.mxu0 0.0
    %344 = vmatpush1.msra.mxu0 0.0
    %345 = vmatprep.subr.mxu0 0.0
    %346 = vmatpush1.msra.mxu0 0.0
    %347 = vmatprep.subr.mxu0 0.0
    %348 = vmatpush1.msra.mxu0 0.0
    %349 = vmatprep.subr.mxu0 0.0
    %350 = vmatpush1.msra.mxu0 0.0
    %351 = vmatprep.subr.mxu0 0.0
    %352 = vmatpush1.msra.mxu0 0.0
    %353 = vmatprep.subr.mxu0 0.0
    %354 = vmatpush1.msra.mxu0 0.0
    %355 = vmatprep.subr.mxu0 0.0
    %356 = vmatpush1.msra.mxu0 0.0
    %357 = vmatprep.subr.mxu0 0.0
    %358 = vmatpush1.msra.mxu0 0.0
    %359 = vmatprep.subr.mxu0 0.0
    %360 = vmatpush1.msra.mxu0 0.0
    %361 = vmatprep.subr.mxu0 0.0
    %362 = vmatpush1.msra.mxu0 0.0
    %363 = vmatprep.subr.mxu0 0.0
    %364 = vmatpush1.msra.mxu0 0.0
    %365 = vmatprep.subr.mxu0 0.0
    %366 = vmatpush1.msra.mxu0 0.0
    %367 = vmatprep.subr.mxu0 0.0
    %368 = vmatpush1.msra.mxu0 0.0
    %369 = vmatprep.subr.mxu0 0.0
    %370 = vmatpush1.msra.mxu0 0.0
    %371 = vmatprep.subr.mxu0 0.0
    %372 = vmatpush1.msra.mxu0 0.0
    %373 = vmatprep.subr.mxu0 0.0
    %374 = vmatpush1.msra.mxu0 0.0
    %375 = vmatprep.subr.mxu0 0.0
    %376 = vmatpush1.msra.mxu0 0.0
    %377 = vmatprep.subr.mxu0 0.0
    %378 = vmatpush1.msra.mxu0 0.0
    %379 = vmatprep.subr.mxu0 0.0
    %380 = vmatpush1.msra.mxu0 0.0
    %381 = vmatprep.subr.mxu0 0.0
    %382 = vmatpush1.msra.mxu0 0.0
    %383 = vmatprep.subr.mxu0 0.0
    %384 = vmatpush1.msra.mxu0 0.0
    %385 = vmatprep.subr.mxu0 0.0
    %386 = vmatpush1.msra.mxu0 0.0
    %387 = vmatprep.subr.mxu0 0.0
    %388 = vmatpush1.msra.mxu0 0.0
    %389 = vmatprep.subr.mxu0 0.0
    %390 = vmatpush1.msra.mxu0 0.0
    %391 = vmatprep.subr.mxu0 0.0
    %392 = vmatpush1.msra.mxu0 0.0
    %393 = vmatprep.subr.mxu0 0.0
    %394 = vmatpush1.msra.mxu0 0.0
    %395 = vmatprep.subr.mxu0 0.0
    %396 = vmatpush1.msra.mxu0 0.0
    %397 = vmatprep.subr.mxu0 0.0
    %398 = vmatpush1.msra.mxu0 0.0
    %399 = vmatprep.subr.mxu0 0.0
    %400 = vmatpush1.msra.mxu0 0.0
    %401 = vmatprep.subr.mxu0 0.0
    %402 = vmatpush1.msra.mxu0 0.0
    %403 = vmatprep.subr.mxu0 0.0
    %404 = vmatpush1.msra.mxu0 0.0
    %405 = vmatprep.mubr.f32.mxu0 0.0
    %406 = vmatmul.mubr.f32.gmra.mrb[0].mxu0 %v336
    %v407 = vpop.f32.mrb[0].mxu0
    %v408 = vadd.f32 0.0, %v407
    %v409 = vpop.f32.mrb[0].mxu0
    %410 = vmatprep.mubr.f32.mxu0 0.0
    %411 = vmatmul.mubr.f32.gmra.mrb[0].mxu0 %v339
    %v412 = vpop.f32.mrb[0].mxu0
    %v413 = vadd.f32 0.0, %v412
    %v414 = vpop.f32.mrb[0].mxu0
    %415 = vdwg.mxu0
    %v416 = vld [vmem:[%s0] sm:$0xff]
    %v417 = vld [vmem:[%s0 + $0x8] sm:$0xff]
    %v418 = vmul.f32 %v416, %v408
    %v419 = vmul.f32 %v417, %v413
    %420 = vst [vmem:[#allocation2] sm:$0xff] %v418
    %421 = vst [vmem:[#allocation2 + $0x8] sm:$0xff] %v419
    // Predicated region
    $region30: #{tpu_custom_call.1} parent=1 // pred_check
      _
    $region31: #{tpu_custom_call.1} parent=1 // pred_check_branch
      %423 = sbr.rel (0) target = $region33
    $region32: #{tpu_custom_call.1} parent=1 // pred_region
      _
    $region33: #{tpu_custom_call.1} parent=1 // pred_fallthru
      _
    // Predicated region
    $region34: #{tpu_custom_call.1} parent=1 // pred_check
      _
    $region35: #{tpu_custom_call.1} parent=1 // pred_check_branch
      %425 = sbr.rel (0) target = $region37
    $region36: #{tpu_custom_call.1} parent=1 // pred_region
      %s427 = ssub.s32 256, 256
      %428 = vsyncadd [#allocation3], %s427
      %s429 = sshll.u32 [#allocation2], 4
      %s430 = int_to_ptr.vmem [resolvable:$true] %s429
      %435 = dma.vmem_to_hbm [thread:$0]  %s430, 256, %s8, [#allocation3], 128, 128, 8
    $region37: #{tpu_custom_call.1} parent=1 // pred_fallthru
      _
    // Predicated region
    $region38: #{tpu_custom_call.1} parent=1 // pred_check
      _
    $region39: #{tpu_custom_call.1} parent=1 // pred_check_branch
      %437 = sbr.rel (0) target = $region41
    $region40: #{tpu_custom_call.1} parent=1 // pred_region
      _
    $region41: #{tpu_custom_call.1} parent=1 // pred_fallthru
      _
    // Predicated region
    $region42: #{tpu_custom_call.1} parent=1 // pred_check
      _
    $region43: #{tpu_custom_call.1} parent=1 // pred_check_branch
      %439 = sbr.rel (0) target = $region45
    $region44: #{tpu_custom_call.1} parent=1 // pred_region
      %440 = dma.done [#allocation3], 256
    $region45: #{tpu_custom_call.1} parent=1 // pred_fallthru
      _
    %441 = vsyncpa [#allocation3], 1

// kernel: tpu_custom_call.1
$region0: #{tpu_custom_call.1}
  #allocation0 [shape = 'u32[]', space=smem, size = 0x4, offset = 0x4, fixed_abs, tag = 'smem constant byte address 0x4 - core index']
  #allocation1 [shape = 'u32[144,128]{1,0:T(1,128)}', space=vmem, size = 0x12000, scoped, tag = 'internal scratch']
  %s0 = inlined_call_operand.vmem [shape: f32[16,128], index: 0, kind: input, shape index: {}]
  %s1 = inlined_call_operand.vmem [shape: f32[128,8], index: 1, kind: input, shape index: {}]
  %s2 = inlined_call_operand.vmem [shape: f32[8,128], index: 2, kind: input, shape index: {}]
  %s3 = inlined_call_operand.vmem [shape: f32[8,4], index: 3, kind: input, shape index: {}]
  %s4 = inlined_call_operand.vmem [shape: f32[1,4], index: 4, kind: input, shape index: {}]
  %s5 = inlined_call_operand.vmem [shape: f32[4,8], index: 5, kind: input, shape index: {}]
  %s6 = inlined_call_operand.vmem [shape: f32[1,8], index: 6, kind: input, shape index: {}]
  %s7 = inlined_call_operand.vmem [shape: f32[16,8], index: 7, kind: output, shape index: {0}]
  %s8 = inlined_call_operand.hbm [shape: f32[16,128], index: 8, kind: output, shape index: {1}]
  %9 = xla_tuple %s7, %s8
  %s10 = sld [smem:[#allocation0]]
  $region46: #{tpu_custom_call.1} parent=0
    _
  %s12 = ssub.s32 1, %s10
  %s13 = scalar_select 0, %s12, %s10
  $region1: #{tpu_custom_call.1} parent=0
    #allocation2 [shape = 'u8[8192]{0}', space=vmem, size = 0x2000, scoped, tag = 'output window, operand 1, single buffered']
    #allocation3 [shape = 's32[1]{0}', space=sflag, size = 0x4, scoped, tag = 'scoped memory for tpu_custom_call.1']
    %14 = vsyncpa [#allocation3], 0
    // Predicated region
    $region2: #{tpu_custom_call.1} parent=1 // pred_check
      _
    $region3: #{tpu_custom_call.1} parent=1 // pred_check_branch
      %16 = sbr.rel (0) target = $region5
    $region4: #{tpu_custom_call.1} parent=1 // pred_region
      _
    $region5: #{tpu_custom_call.1} parent=1 // pred_fallthru
      _
    // Predicated region
    $region6: #{tpu_custom_call.1} parent=1 // pred_check
      _
    $region7: #{tpu_custom_call.1} parent=1 // pred_check_branch
      %18 = sbr.rel (0) target = $region9
    $region8: #{tpu_custom_call.1} parent=1 // pred_region
      _
    $region9: #{tpu_custom_call.1} parent=1 // pred_fallthru
      _
    // Predicated region
    $region10: #{tpu_custom_call.1} parent=1 // pred_check
      _
    $region11: #{tpu_custom_call.1} parent=1 // pred_check_branch
      %20 = sbr.rel (0) target = $region13
    $region12: #{tpu_custom_call.1} parent=1 // pred_region
      _
    $region13: #{tpu_custom_call.1} parent=1 // pred_fallthru
      _
    // Predicated region
    $region14: #{tpu_custom_call.1} parent=1 // pred_check
      _
    $region15: #{tpu_custom_call.1} parent=1 // pred_check_branch
      %22 = sbr.rel (0) target = $region17
    $region16: #{tpu_custom_call.1} parent=1 // pred_region
      _
    $region17: #{tpu_custom_call.1} parent=1 // pred_fallthru
      _
    // Predicated region
    $region18: #{tpu_custom_call.1} parent=1 // pred_check
      _
    $region19: #{tpu_custom_call.1} parent=1 // pred_check_branch
      %24 = sbr.rel (0) target = $region21
    $region20: #{tpu_custom_call.1} parent=1 // pred_region
      _
    $region21: #{tpu_custom_call.1} parent=1 // pred_fallthru
      _
    // Predicated region
    $region22: #{tpu_custom_call.1} parent=1 // pred_check
      _
    $region23: #{tpu_custom_call.1} parent=1 // pred_check_branch
      %26 = sbr.rel (0) target = $region25
    $region24: #{tpu_custom_call.1} parent=1 // pred_region
      _
    $region25: #{tpu_custom_call.1} parent=1 // pred_fallthru
      _
    // Predicated region
    $region26: #{tpu_custom_call.1} parent=1 // pred_check
      _
    $region27: #{tpu_custom_call.1} parent=1 // pred_check_branch
      %28 = sbr.rel (0) target = $region29
    $region28: #{tpu_custom_call.1} parent=1 // pred_region
      _
    $region29: #{tpu_custom_call.1} parent=1 // pred_fallthru
      _
    %v29 = vld [vmem:[%s0] sm:$0xff]
    %v30 = vld [vmem:[%s0 + $0x8] sm:$0xff]
    %v31 = vld [vmem:[%s1] sm:$0xff]
    %v32 = vld [vmem:[%s1 + $0x8] sm:$0xff]
    %v33 = vld [vmem:[%s1 + $0x10] sm:$0xff]
    %v34 = vld [vmem:[%s1 + $0x18] sm:$0xff]
    %v35 = vld [vmem:[%s1 + $0x20] sm:$0xff]
    %v36 = vld [vmem:[%s1 + $0x28] sm:$0xff]
    %v37 = vld [vmem:[%s1 + $0x30] sm:$0xff]
    %v38 = vld [vmem:[%s1 + $0x38] sm:$0xff]
    %v39 = vld [vmem:[%s1 + $0x40] sm:$0xff]
    %v40 = vld [vmem:[%s1 + $0x48] sm:$0xff]
    %v41 = vld [vmem:[%s1 + $0x50] sm:$0xff]
    %v42 = vld [vmem:[%s1 + $0x58] sm:$0xff]
    %v43 = vld [vmem:[%s1 + $0x60] sm:$0xff]
    %v44 = vld [vmem:[%s1 + $0x68] sm:$0xff]
    %v45 = vld [vmem:[%s1 + $0x70] sm:$0xff]
    %v46 = vld [vmem:[%s1 + $0x78] sm:$0xff]
    %47 = vmatprep.subr.mxu0 0.0
    %48 = vmatpush1.msra.mxu0 %v31
    %49 = vmatprep.subr.mxu0 0.0
    %50 = vmatpush1.msra.mxu0 %v32
    %51 = vmatprep.subr.mxu0 0.0
    %52 = vmatpush1.msra.mxu0 %v33
    %53 = vmatprep.subr.mxu0 0.0
    %54 = vmatpush1.msra.mxu0 %v34
    %55 = vmatprep.subr.mxu0 0.0
    %56 = vmatpush1.msra.mxu0 %v35
    %57 = vmatprep.subr.mxu0 0.0
    %58 = vmatpush1.msra.mxu0 %v36
    %59 = vmatprep.subr.mxu0 0.0
    %60 = vmatpush1.msra.mxu0 %v37
    %61 = vmatprep.subr.mxu0 0.0
    %62 = vmatpush1.msra.mxu0 %v38
    %63 = vmatprep.subr.mxu0 0.0
    %64 = vmatpush1.msra.mxu0 %v39
    %65 = vmatprep.subr.mxu0 0.0
    %66 = vmatpush1.msra.mxu0 %v40
    %67 = vmatprep.subr.mxu0 0.0
    %68 = vmatpush1.msra.mxu0 %v41
    %69 = vmatprep.subr.mxu0 0.0
    %70 = vmatpush1.msra.mxu0 %v42
    %71 = vmatprep.subr.mxu0 0.0
    %72 = vmatpush1.msra.mxu0 %v43
    %73 = vmatprep.subr.mxu0 0.0
    %74 = vmatpush1.msra.mxu0 %v44
    %75 = vmatprep.subr.mxu0 0.0
    %76 = vmatpush1.msra.mxu0 %v45
    %77 = vmatprep.subr.mxu0 0.0
    %78 = vmatpush1.msra.mxu0 %v46
    %79 = vmatprep.subr.mxu0 0.0
    %80 = vmatpush1.msra.mxu0 0.0
    %81 = vmatprep.subr.mxu0 0.0
    %82 = vmatpush1.msra.mxu0 0.0
    %83 = vmatprep.subr.mxu0 0.0
    %84 = vmatpush1.msra.mxu0 0.0
    %85 = vmatprep.subr.mxu0 0.0
    %86 = vmatpush1.msra.mxu0 0.0
    %87 = vmatprep.subr.mxu0 0.0
    %88 = vmatpush1.msra.mxu0 0.0
    %89 = vmatprep.subr.mxu0 0.0
    %90 = vmatpush1.msra.mxu0 0.0
    %91 = vmatprep.subr.mxu0 0.0
    %92 = vmatpush1.msra.mxu0 0.0
    %93 = vmatprep.subr.mxu0 0.0
    %94 = vmatpush1.msra.mxu0 0.0
    %95 = vmatprep.subr.mxu0 0.0
    %96 = vmatpush1.msra.mxu0 0.0
    %97 = vmatprep.subr.mxu0 0.0
    %98 = vmatpush1.msra.mxu0 0.0
    %99 = vmatprep.subr.mxu0 0.0
    %100 = vmatpush1.msra.mxu0 0.0
    %101 = vmatprep.subr.mxu0 0.0
    %102 = vmatpush1.msra.mxu0 0.0
    %103 = vmatprep.subr.mxu0 0.0
    %104 = vmatpush1.msra.mxu0 0.0
    %105 = vmatprep.subr.mxu0 0.0
    %106 = vmatpush1.msra.mxu0 0.0
    %107 = vmatprep.subr.mxu0 0.0
    %108 = vmatpush1.msra.mxu0 0.0
    %109 = vmatprep.subr.mxu0 0.0
    %110 = vmatpush1.msra.mxu0 0.0
    %111 = vmatprep.mubr.f32.mxu0 0.0
    %112 = vmatmul.mubr.f32.gmra.mrb[0].mxu0 %v29
    %v113 = vpop.f32.mrb[0].mxu0
    %v114 = vadd.f32 0.0, %v113
    %v115 = vpop.f32.mrb[0].mxu0
    %116 = vmatprep.mubr.f32.mxu0 0.0
    %117 = vmatmul.mubr.f32.gmra.mrb[0].mxu0 %v30
    %v118 = vpop.f32.mrb[0].mxu0
    %v119 = vadd.f32 0.0, %v118
    %v120 = vpop.f32.mrb[0].mxu0
    %121 = vdwg.mxu0
    %v122 = vmul.f32 %v114, 0.0625
    %v123 = vmul.f32 %v119, 0.0625
    %v124 = vld [vmem:[%s3] sm:$0xff]
    %v125 = vld [vmem:[%s4] sm:$0x1]
    %v127 = vlaneseq
    %v128 = vshrl.u32 %v127, 7
    %v129 = vsub.s32 0, %v128
    %v130 = vrot.slane %v125, %v129
    %vm132 = vcmask 64512
    %v134 = vsel %vm132, %v122, 0
    %v137 = vsel %vm132, %v123, 0
    %139 = vmatprep.subr.mxu0 0.0
    %140 = vmatpush1.msra.mxu0 %v124
    %141 = vmatprep.subr.mxu0 0.0
    %142 = vmatpush1.msra.mxu0 0.0
    %143 = vmatprep.subr.mxu0 0.0
    %144 = vmatpush1.msra.mxu0 0.0
    %145 = vmatprep.subr.mxu0 0.0
    %146 = vmatpush1.msra.mxu0 0.0
    %147 = vmatprep.subr.mxu0 0.0
    %148 = vmatpush1.msra.mxu0 0.0
    %149 = vmatprep.subr.mxu0 0.0
    %150 = vmatpush1.msra.mxu0 0.0
    %151 = vmatprep.subr.mxu0 0.0
    %152 = vmatpush1.msra.mxu0 0.0
    %153 = vmatprep.subr.mxu0 0.0
    %154 = vmatpush1.msra.mxu0 0.0
    %155 = vmatprep.subr.mxu0 0.0
    %156 = vmatpush1.msra.mxu0 0.0
    %157 = vmatprep.subr.mxu0 0.0
    %158 = vmatpush1.msra.mxu0 0.0
    %159 = vmatprep.subr.mxu0 0.0
    %160 = vmatpush1.msra.mxu0 0.0
    %161 = vmatprep.subr.mxu0 0.0
    %162 = vmatpush1.msra.mxu0 0.0
    %163 = vmatprep.subr.mxu0 0.0
    %164 = vmatpush1.msra.mxu0 0.0
    %165 = vmatprep.subr.mxu0 0.0
    %166 = vmatpush1.msra.mxu0 0.0
    %167 = vmatprep.subr.mxu0 0.0
    %168 = vmatpush1.msra.mxu0 0.0
    %169 = vmatprep.subr.mxu0 0.0
    %170 = vmatpush1.msra.mxu0 0.0
    %171 = vmatprep.subr.mxu0 0.0
    %172 = vmatpush1.msra.mxu0 0.0
    %173 = vmatprep.subr.mxu0 0.0
    %174 = vmatpush1.msra.mxu0 0.0
    %175 = vmatprep.subr.mxu0 0.0
    %176 = vmatpush1.msra.mxu0 0.0
    %177 = vmatprep.subr.mxu0 0.0
    %178 = vmatpush1.msra.mxu0 0.0
    %179 = vmatprep.subr.mxu0 0.0
    %180 = vmatpush1.msra.mxu0 0.0
    %181 = vmatprep.subr.mxu0 0.0
    %182 = vmatpush1.msra.mxu0 0.0
    %183 = vmatprep.subr.mxu0 0.0
    %184 = vmatpush1.msra.mxu0 0.0
    %185 = vmatprep.subr.mxu0 0.0
    %186 = vmatpush1.msra.mxu0 0.0
    %187 = vmatprep.subr.mxu0 0.0
    %188 = vmatpush1.msra.mxu0 0.0
    %189 = vmatprep.subr.mxu0 0.0
    %190 = vmatpush1.msra.mxu0 0.0
    %191 = vmatprep.subr.mxu0 0.0
    %192 = vmatpush1.msra.mxu0 0.0
    %193 = vmatprep.subr.mxu0 0.0
    %194 = vmatpush1.msra.mxu0 0.0
    %195 = vmatprep.subr.mxu0 0.0
    %196 = vmatpush1.msra.mxu0 0.0
    %197 = vmatprep.subr.mxu0 0.0
    %198 = vmatpush1.msra.mxu0 0.0
    %199 = vmatprep.subr.mxu0 0.0
    %200 = vmatpush1.msra.mxu0 0.0
    %201 = vmatprep.subr.mxu0 0.0
    %202 = vmatpush1.msra.mxu0 0.0
    %203 = vmatprep.mubr.f32.mxu0 0.0
    %204 = vmatmul.mubr.f32.gmra.mrb[0].mxu0 %v134
    %v205 = vpop.f32.mrb[0].mxu0
    %v206 = vadd.f32 %v130, %v205
    %v207 = vpop.f32.mrb[0].mxu0
    %208 = vmatprep.mubr.f32.mxu0 0.0
    %209 = vmatmul.mubr.f32.gmra.mrb[0].mxu0 %v137
    %v210 = vpop.f32.mrb[0].mxu0
    %v211 = vadd.f32 %v130, %v210
    %v212 = vpop.f32.mrb[0].mxu0
    %213 = vdwg.mxu0
    %v214 = vtanh.pop %v206
    %v215 = vtanh.pop %v211
    %v216 = vld [vmem:[%s5] sm:$0xf]
    %v217 = vld [vmem:[%s6] sm:$0x1]
    %v219 = vlaneseq
    %v220 = vshrl.u32 %v219, 7
    %v221 = vsub.s32 0, %v220
    %v222 = vrot.slane %v217, %v221
    %vm224 = vcmask 31744
    %v226 = vsel %vm224, %v214, 0
    %v229 = vsel %vm224, %v215, 0
    %vm231 = vcmask 1043456
    %v233 = vsel %vm231, %v216, 0
    %235 = vmatprep.subr.mxu0 0.0
    %236 = vmatpush1.msra.mxu0 %v233
    %237 = vmatprep.subr.mxu0 0.0
    %238 = vmatpush1.msra.mxu0 0.0
    %239 = vmatprep.subr.mxu0 0.0
    %240 = vmatpush1.msra.mxu0 0.0
    %241 = vmatprep.subr.mxu0 0.0
    %242 = vmatpush1.msra.mxu0 0.0
    %243 = vmatprep.subr.mxu0 0.0
    %244 = vmatpush1.msra.mxu0 0.0
    %245 = vmatprep.subr.mxu0 0.0
    %246 = vmatpush1.msra.mxu0 0.0
    %247 = vmatprep.subr.mxu0 0.0
    %248 = vmatpush1.msra.mxu0 0.0
    %249 = vmatprep.subr.mxu0 0.0
    %250 = vmatpush1.msra.mxu0 0.0
    %251 = vmatprep.subr.mxu0 0.0
    %252 = vmatpush1.msra.mxu0 0.0
    %253 = vmatprep.subr.mxu0 0.0
    %254 = vmatpush1.msra.mxu0 0.0
    %255 = vmatprep.subr.mxu0 0.0
    %256 = vmatpush1.msra.mxu0 0.0
    %257 = vmatprep.subr.mxu0 0.0
    %258 = vmatpush1.msra.mxu0 0.0
    %259 = vmatprep.subr.mxu0 0.0
    %260 = vmatpush1.msra.mxu0 0.0
    %261 = vmatprep.subr.mxu0 0.0
    %262 = vmatpush1.msra.mxu0 0.0
    %263 = vmatprep.subr.mxu0 0.0
    %264 = vmatpush1.msra.mxu0 0.0
    %265 = vmatprep.subr.mxu0 0.0
    %266 = vmatpush1.msra.mxu0 0.0
    %267 = vmatprep.subr.mxu0 0.0
    %268 = vmatpush1.msra.mxu0 0.0
    %269 = vmatprep.subr.mxu0 0.0
    %270 = vmatpush1.msra.mxu0 0.0
    %271 = vmatprep.subr.mxu0 0.0
    %272 = vmatpush1.msra.mxu0 0.0
    %273 = vmatprep.subr.mxu0 0.0
    %274 = vmatpush1.msra.mxu0 0.0
    %275 = vmatprep.subr.mxu0 0.0
    %276 = vmatpush1.msra.mxu0 0.0
    %277 = vmatprep.subr.mxu0 0.0
    %278 = vmatpush1.msra.mxu0 0.0
    %279 = vmatprep.subr.mxu0 0.0
    %280 = vmatpush1.msra.mxu0 0.0
    %281 = vmatprep.subr.mxu0 0.0
    %282 = vmatpush1.msra.mxu0 0.0
    %283 = vmatprep.subr.mxu0 0.0
    %284 = vmatpush1.msra.mxu0 0.0
    %285 = vmatprep.subr.mxu0 0.0
    %286 = vmatpush1.msra.mxu0 0.0
    %287 = vmatprep.subr.mxu0 0.0
    %288 = vmatpush1.msra.mxu0 0.0
    %289 = vmatprep.subr.mxu0 0.0
    %290 = vmatpush1.msra.mxu0 0.0
    %291 = vmatprep.subr.mxu0 0.0
    %292 = vmatpush1.msra.mxu0 0.0
    %293 = vmatprep.subr.mxu0 0.0
    %294 = vmatpush1.msra.mxu0 0.0
    %295 = vmatprep.subr.mxu0 0.0
    %296 = vmatpush1.msra.mxu0 0.0
    %297 = vmatprep.subr.mxu0 0.0
    %298 = vmatpush1.msra.mxu0 0.0
    %299 = vmatprep.mubr.f32.mxu0 0.0
    %300 = vmatmul.mubr.f32.gmra.mrb[0].mxu0 %v226
    %v301 = vpop.f32.mrb[0].mxu0
    %v302 = vadd.f32 %v222, %v301
    %v303 = vpop.f32.mrb[0].mxu0
    %304 = vmatprep.mubr.f32.mxu0 0.0
    %305 = vmatmul.mubr.f32.gmra.mrb[0].mxu0 %v229
    %v306 = vpop.f32.mrb[0].mxu0
    %v307 = vadd.f32 %v222, %v306
    %v308 = vpop.f32.mrb[0].mxu0
    %309 = vdwg.mxu0
    %v310 = vsel %vm132, %v302, -inf
    %311 = vmax.xlane.f32.xlu0 %v310
    %v312 = vpop.xlane.xlu0 %311
    %v313 = vsel %vm132, %v307, -inf
    %314 = vmax.xlane.f32.xlu0 %v313
    %v315 = vpop.xlane.xlu0 %314
    %v316 = vsub.f32 %v302, %v312
    %v317 = vsub.f32 %v307, %v315
    %v318 = vmul.f32 %v316, 1.442695
    %v319 = vpow.pop %v318
    %v320 = vmul.f32 %v317, 1.442695
    %v321 = vpow.pop %v320
    %v322 = vsel %vm132, %v319, 0.0
    %323 = vadd.xlane.f32.xlu0 %v322
    %v324 = vpop.xlane.xlu0 %323
    %v325 = vsel %vm132, %v321, 0.0
    %326 = vadd.xlane.f32.xlu0 %v325
    %v327 = vpop.xlane.xlu0 %326
    %v328 = vrcp.pop %v324
    %v329 = vmul.f32 %v319, %v328
    %v330 = vrcp.pop %v327
    %v331 = vmul.f32 %v321, %v330
    %332 = vst.msk [vmem:[%s7] sm:$0xff] %vm132, %v329
    %333 = vst.msk [vmem:[%s7 + $0x8] sm:$0xff] %vm132, %v331
    %v334 = vld [vmem:[%s2] sm:$0xff]
    %v336 = vsel %vm132, %v329, 0
    %v339 = vsel %vm132, %v331, 0
    %341 = vmatprep.subr.mxu0 0.0
    %342 = vmatpush1.msra.mxu0 %v334
    %343 = vmatprep.subr.mxu0 0.0
    %344 = vmatpush1.msra.mxu0 0.0
    %345 = vmatprep.subr.mxu0 0.0
    %346 = vmatpush1.msra.mxu0 0.0
    %347 = vmatprep.subr.mxu0 0.0
    %348 = vmatpush1.msra.mxu0 0.0
    %349 = vmatprep.subr.mxu0 0.0
    %350 = vmatpush1.msra.mxu0 0.0
    %351 = vmatprep.subr.mxu0 0.0
    %352 = vmatpush1.msra.mxu0 0.0
    %353 = vmatprep.subr.mxu0 0.0
    %354 = vmatpush1.msra.mxu0 0.0
    %355 = vmatprep.subr.mxu0 0.0
    %356 = vmatpush1.msra.mxu0 0.0
    %357 = vmatprep.subr.mxu0 0.0
    %358 = vmatpush1.msra.mxu0 0.0
    %359 = vmatprep.subr.mxu0 0.0
    %360 = vmatpush1.msra.mxu0 0.0
    %361 = vmatprep.subr.mxu0 0.0
    %362 = vmatpush1.msra.mxu0 0.0
    %363 = vmatprep.subr.mxu0 0.0
    %364 = vmatpush1.msra.mxu0 0.0
    %365 = vmatprep.subr.mxu0 0.0
    %366 = vmatpush1.msra.mxu0 0.0
    %367 = vmatprep.subr.mxu0 0.0
    %368 = vmatpush1.msra.mxu0 0.0
    %369 = vmatprep.subr.mxu0 0.0
    %370 = vmatpush1.msra.mxu0 0.0
    %371 = vmatprep.subr.mxu0 0.0
    %372 = vmatpush1.msra.mxu0 0.0
    %373 = vmatprep.subr.mxu0 0.0
    %374 = vmatpush1.msra.mxu0 0.0
    %375 = vmatprep.subr.mxu0 0.0
    %376 = vmatpush1.msra.mxu0 0.0
    %377 = vmatprep.subr.mxu0 0.0
    %378 = vmatpush1.msra.mxu0 0.0
    %379 = vmatprep.subr.mxu0 0.0
    %380 = vmatpush1.msra.mxu0 0.0
    %381 = vmatprep.subr.mxu0 0.0
    %382 = vmatpush1.msra.mxu0 0.0
    %383 = vmatprep.subr.mxu0 0.0
    %384 = vmatpush1.msra.mxu0 0.0
    %385 = vmatprep.subr.mxu0 0.0
    %386 = vmatpush1.msra.mxu0 0.0
    %387 = vmatprep.subr.mxu0 0.0
    %388 = vmatpush1.msra.mxu0 0.0
    %389 = vmatprep.subr.mxu0 0.0
    %390 = vmatpush1.msra.mxu0 0.0
    %391 = vmatprep.subr.mxu0 0.0
    %392 = vmatpush1.msra.mxu0 0.0
    %393 = vmatprep.subr.mxu0 0.0
    %394 = vmatpush1.msra.mxu0 0.0
    %395 = vmatprep.subr.mxu0 0.0
    %396 = vmatpush1.msra.mxu0 0.0
    %397 = vmatprep.subr.mxu0 0.0
    %398 = vmatpush1.msra.mxu0 0.0
    %399 = vmatprep.subr.mxu0 0.0
    %400 = vmatpush1.msra.mxu0 0.0
    %401 = vmatprep.subr.mxu0 0.0
    %402 = vmatpush1.msra.mxu0 0.0
    %403 = vmatprep.subr.mxu0 0.0
    %404 = vmatpush1.msra.mxu0 0.0
    %405 = vmatprep.mubr.f32.mxu0 0.0
    %406 = vmatmul.mubr.f32.gmra.mrb[0].mxu0 %v336
    %v407 = vpop.f32.mrb[0].mxu0
    %v408 = vadd.f32 0.0, %v407
    %v409 = vpop.f32.mrb[0].mxu0
    %410 = vmatprep.mubr.f32.mxu0 0.0
    %411 = vmatmul.mubr.f32.gmra.mrb[0].mxu0 %v339
    %v412 = vpop.f32.mrb[0].mxu0
    %v413 = vadd.f32 0.0, %v412
    %v414 = vpop.f32.mrb[0].mxu0
    %415 = vdwg.mxu0
    %v416 = vld [vmem:[%s0] sm:$0xff]
    %v417 = vld [vmem:[%s0 + $0x8] sm:$0xff]
    %v418 = vmul.f32 %v416, %v408
    %v419 = vmul.f32 %v417, %v413
    %420 = vst [vmem:[#allocation2] sm:$0xff] %v418
    %421 = vst [vmem:[#allocation2 + $0x8] sm:$0xff] %v419
    // Predicated region
    $region30: #{tpu_custom_call.1} parent=1 // pred_check
      _
    $region31: #{tpu_custom_call.1} parent=1 // pred_check_branch
      %423 = sbr.rel (0) target = $region33
    $region32: #{tpu_custom_call.1} parent=1 // pred_region
      _
    $region33: #{tpu_custom_call.1} parent=1 // pred_fallthru
      _
    // Predicated region
    $region34: #{tpu_custom_call.1} parent=1 // pred_check
      _
    $region35: #{tpu_custom_call.1} parent=1 // pred_check_branch
      %425 = sbr.rel (0) target = $region37
    $region36: #{tpu_custom_call.1} parent=1 // pred_region
      %s427 = ssub.s32 256, 256
      %428 = vsyncadd [#allocation3], %s427
      %s429 = sshll.u32 [#allocation2], 4
      %s430 = int_to_ptr.vmem [resolvable:$true] %s429
      %435 = dma.vmem_to_hbm [thread:$0]  %s430, 256, %s8, [#allocation3], 128, 128, 8
    $region37: #{tpu_custom_call.1} parent=1 // pred_fallthru
      _
    // Predicated region
    $region38: #{tpu_custom_call.1} parent=1 // pred_check
      _
    $region39: #{tpu_custom_call.1} parent=1 // pred_check_branch
      %437 = sbr.rel (0) target = $region41
    $region40: #{tpu_custom_call.1} parent=1 // pred_region
      _
    $region41: #{tpu_custom_call.1} parent=1 // pred_fallthru
      _
    // Predicated region
    $region42: #{tpu_custom_call.1} parent=1 // pred_check
      _
    $region43: #{tpu_custom_call.1} parent=1 // pred_check_branch
      %439 = sbr.rel (0) target = $region45
    $region44: #{tpu_custom_call.1} parent=1 // pred_region
      %440 = dma.done [#allocation3], 256
    $region45: #{tpu_custom_call.1} parent=1 // pred_fallthru
      _
    %441 = vsyncpa [#allocation3], 1

</llo_original>
